<compile_context>
chip_gen: v5e
topology: v5e:2x2
jax: 0.10.0
libtpu: 0.0.40
codegen_flags: <defaults>
</compile_context>

<pallas_src>
import functools

import jax
import jax.numpy as jnp
from jax import lax
from jax.experimental import pallas as pl
from jax.experimental.pallas import tpu as pltpu


def _round_up(x, m):
    return (x + m - 1) // m * m


def _cdiv(a, b):
    return -(-a // b)


def _adain_kernel(x_ref, wb_ref, o_ref, *, eps, inv_hw):
    # x_ref: (tm, HW)   wb_ref: (tm, 2) = [weight | bias]   o_ref: (tm, HW)
    x = x_ref[...].astype(jnp.float32)
    mean = jnp.sum(x, axis=-1, keepdims=True) * inv_hw           # (tm, 1)
    xc = x - mean                                                # only feeds the reduction
    var = jnp.sum(xc * xc, axis=-1, keepdims=True) * inv_hw      # biased variance
    w = wb_ref[:, 0:1]
    b = wb_ref[:, 1:2]
    scale = w * lax.rsqrt(var + eps)                             # (tm, 1), EUP
    shift = b - mean * scale                                     # (tm, 1)
    # Single fused pass over the tile: out = x*scale + shift.
    o_ref[...] = (x * scale + shift).astype(o_ref.dtype)


def _vmem_budgets():
    """(tile_budget_bytes, vmem_limit_bytes) sized for the current chip."""
    try:
        cap = int(pltpu.get_tpu_info().vmem_capacity_bytes)
    except Exception:  # no TPU / older jax: assume 128 MiB (v5e/v6e)
        cap = 128 * 1024 * 1024
    tile_budget = min((cap * 3) // 4, 96 * 1024 * 1024)   # v5e/v6e: 96 MiB, v7x: 48 MiB
    vmem_limit = min(cap - (8 << 20), 112 * 1024 * 1024)  # scoped limit, keep headroom
    return tile_budget, int(vmem_limit)


def _choose_tm(bc, hw, in_bytes, out_bytes, vmem_budget):
    """Largest row tile that fits the VMEM budget, with >=2 grid steps when
    possible so v7x's two TensorCores both get work."""
    granule = 8 if in_bytes >= 4 else (16 if in_bytes == 2 else 32)
    # Real footprint per row: double-buffered in + out tiles, f32 upcast +
    # one elementwise temporary, and the lane-padded (tm, 2)->(tm, 128) w/b
    # tile (double-buffered).
    per_row = (2 * hw * in_bytes + 2 * hw * out_bytes + 2 * hw * 4 + 2 * 128 * 4)
    max_rows = _round_up(bc, granule)
    vmem_rows = max(granule, (vmem_budget // per_row) // granule * granule)
    tm = min(vmem_rows, max_rows)

    # Megacore: guarantee at least 2 grid steps when there are enough rows.
    if tm >= max_rows and max_rows >= 2 * granule:
        tm = _round_up(max_rows // 2, granule)

    # Prefer an even number of steps when it is cheap (balanced TC split).
    n = _cdiv(max_rows, tm)
    if n >= 3 and n % 2 == 1:
        tm2 = _round_up(_cdiv(max_rows, n + 1), granule)
        if tm2 >= granule and _cdiv(max_rows, tm2) == n + 1:
            tm = tm2
    return tm


def adaptive_instance_norm_2d(x, weight, bias, *, eps=1e-5):
    """Pallas equivalent of AdaptiveInstanceNorm2d.forward.

    x:      (B, C, H, W), float32 or bfloat16
    weight: (B*C,) adaptive scale (assigned externally, e.g. by a style MLP)
    bias:   (B*C,) adaptive shift
    """
    b, c, h, w = x.shape
    bc, hw = b * c, h * w

    xr = x.reshape(bc, hw)                                        # contiguous view, no copy
    wb = jnp.stack([weight.reshape(bc), bias.reshape(bc)],
                   axis=-1).astype(jnp.float32)                   # (bc, 2), one tiny DMA/step

    in_bytes = jnp.dtype(x.dtype).itemsize
    out_bytes = in_bytes
    tile_budget, vmem_limit = _vmem_budgets()
    tm = _choose_tm(bc, hw, in_bytes, out_bytes, tile_budget)
    grid = (pl.cdiv(bc, tm),)                                     # ragged last block is clipped

    kernel = functools.partial(_adain_kernel, eps=float(eps),
                               inv_hw=1.0 / float(hw))

    # TODO(synk): if H*W is not a multiple of 128 (e.g. 14x14), lane-pad the
    # spatial axis and mask the statistics so output stores stay lane-dense.
    out = pl.pallas_call(
        kernel,
        out_shape=jax.ShapeDtypeStruct((bc, hw), x.dtype),
        grid_spec=pltpu.PrefetchScalarGridSpec(
            num_scalar_prefetch=0,
            grid=grid,
            in_specs=[
                pl.BlockSpec((tm, hw), lambda i: (i, 0)),   # x rows (lane-dense)
                pl.BlockSpec((tm, 2), lambda i: (i, 0)),    # fused [weight | bias]
            ],
            out_specs=pl.BlockSpec((tm, hw), lambda i: (i, 0)),
        ),
        compiler_params=pltpu.CompilerParams(
            dimension_semantics=("parallel",),
            vmem_limit_bytes=vmem_limit),
        cost_estimate=pl.CostEstimate(
            flops=6 * bc * hw,
            transcendentals=bc,
            bytes_accessed=bc * hw * (in_bytes + out_bytes) + bc * 2 * 4),
    )(xr, wb)

    # TODO(synk): the PyTorch module also momentum-updates running_mean /
    # running_var buffers (a stateful side effect that does not affect the
    # returned tensor); expose those as extra outputs if callers need them.
    return out.reshape(b, c, h, w)


def _reference(x, weight, bias, eps=1e-5):
    b, c, h, w = x.shape
    xr = x.reshape(b * c, h * w).astype(jnp.float32)
    mean = xr.mean(axis=1, keepdims=True)
    var = xr.var(axis=1, keepdims=True)          # biased, like batch_norm training
    out = (xr - mean) / jnp.sqrt(var + eps)
    out = out * weight[:, None] + bias[:, None]
    return out.reshape(b, c, h, w).astype(x.dtype)


if __name__ == "__main__":
    key = jax.random.PRNGKey(0)
    b, c, h, w = 2, 4, 16, 16                    # x: (2, 4, 16, 16), H*W = 256 lanes

    k_x, k_w, k_b = jax.random.split(key, 3)
    x = jax.random.normal(k_x, (b, c, h, w), dtype=jnp.float32)
    # Adaptive affine params (normally produced by a style MLP), one per (b, c).
    weight = 1.0 + 0.5 * jax.random.normal(k_w, (b * c,), dtype=jnp.float32)
    bias = 0.1 * jax.random.normal(k_b, (b * c,), dtype=jnp.float32)

    out = adaptive_instance_norm_2d(x, weight, bias, eps=1e-5)
    out = jax.block_until_ready(out)

    ref = _reference(x, weight, bias, eps=1e-5)
    assert out.shape == (b, c, h, w)
    assert jnp.allclose(out, ref, atol=1e-4, rtol=1e-4), "mismatch vs reference"

    print("KERNEL_OK")
</pallas_src>

<mosaic_0001>
module attributes {stable_mosaic.version = 11 : i64} {
  func.func @_adain_kernel(%arg0: i32, %arg1: memref<8x256xf32, #tpu.memory_space<vmem>>, %arg2: memref<8x2xf32, #tpu.memory_space<vmem>>, %arg3: memref<8x256xf32, #tpu.memory_space<vmem>>) attributes {dimension_semantics = [#tpu.dimension_semantics<parallel>], iteration_bounds = array<i64: 1>, scalar_prefetch = 0 : i64, scratch_operands = 0 : i64, tpu.core_type = #tpu.core_type<tc>, window_params = [{transform_indices = @transform_0, window_bounds = array<i64: 8, 256>}, {transform_indices = @transform_1, window_bounds = array<i64: 8, 2>}, {transform_indices = @transform_2, window_bounds = array<i64: 8, 256>}]} {
    %c0 = arith.constant 0 : index
    %c0_0 = arith.constant 0 : index
    %0 = vector.load %arg1[%c0, %c0_0] : memref<8x256xf32, #tpu.memory_space<vmem>>, vector<8x256xf32>
    %cst = arith.constant dense<0.000000e+00> : vector<8xf32>
    %1 = vector.multi_reduction <add>, %0, %cst [1] : vector<8x256xf32> to vector<8xf32>
    %2 = vector.shape_cast %1 : vector<8xf32> to vector<8x1xf32>
    %cst_1 = arith.constant 3.906250e-03 : f32
    %3 = vector.broadcast %cst_1 : f32 to vector<8x1xf32>
    %4 = arith.mulf %2, %3 : vector<8x1xf32>
    %5 = vector.broadcast %4 : vector<8x1xf32> to vector<8x256xf32>
    %6 = arith.subf %0, %5 : vector<8x256xf32>
    %7 = arith.mulf %6, %6 : vector<8x256xf32>
    %cst_2 = arith.constant dense<0.000000e+00> : vector<8xf32>
    %8 = vector.multi_reduction <add>, %7, %cst_2 [1] : vector<8x256xf32> to vector<8xf32>
    %9 = vector.shape_cast %8 : vector<8xf32> to vector<8x1xf32>
    %cst_3 = arith.constant 3.906250e-03 : f32
    %10 = vector.broadcast %cst_3 : f32 to vector<8x1xf32>
    %11 = arith.mulf %9, %10 : vector<8x1xf32>
    %c0_4 = arith.constant 0 : index
    %c0_5 = arith.constant 0 : index
    %12 = vector.load %arg2[%c0_4, %c0_5] : memref<8x2xf32, #tpu.memory_space<vmem>>, vector<8x1xf32>
    %c0_6 = arith.constant 0 : index
    %c1 = arith.constant 1 : index
    %13 = vector.load %arg2[%c0_6, %c1] : memref<8x2xf32, #tpu.memory_space<vmem>>, vector<8x1xf32>
    %cst_7 = arith.constant 9.99999974E-6 : f32
    %14 = vector.broadcast %cst_7 : f32 to vector<8x1xf32>
    %15 = arith.addf %11, %14 : vector<8x1xf32>
    %16 = math.rsqrt %15 : vector<8x1xf32>
    %17 = arith.mulf %12, %16 : vector<8x1xf32>
    %18 = arith.mulf %4, %17 : vector<8x1xf32>
    %19 = arith.subf %13, %18 : vector<8x1xf32>
    %20 = vector.broadcast %17 : vector<8x1xf32> to vector<8x256xf32>
    %21 = arith.mulf %0, %20 : vector<8x256xf32>
    %22 = vector.broadcast %19 : vector<8x1xf32> to vector<8x256xf32>
    %23 = arith.addf %21, %22 : vector<8x256xf32>
    %c0_8 = arith.constant 0 : index
    %c0_9 = arith.constant 0 : index
    %24 = vector.load %arg3[%c0_8, %c0_9] : memref<8x256xf32, #tpu.memory_space<vmem>>, vector<8x256xf32>
    tpu.vector_store %arg3[%c0_8, %c0_9], %23 {strides = array<i32>} : memref<8x256xf32, #tpu.memory_space<vmem>>, vector<8x256xf32>,
    return
  }
  func.func @transform_0(%arg0: i32) -> (i32, i32) {
    %c0_i32 = arith.constant 0 : i32
    %c0_i32_0 = arith.constant 0 : i32
    return %arg0, %c0_i32 : i32, i32
  }
  func.func @transform_1(%arg0: i32) -> (i32, i32) {
    %c0_i32 = arith.constant 0 : i32
    %c0_i32_0 = arith.constant 0 : i32
    return %arg0, %c0_i32 : i32, i32
  }
  func.func @transform_2(%arg0: i32) -> (i32, i32) {
    %c0_i32 = arith.constant 0 : i32
    %c0_i32_0 = arith.constant 0 : i32
    return %arg0, %c0_i32 : i32, i32
  }
}

</mosaic_0001>

<llo_original>
// kernel: tpu_custom_call.1
$region0: #{tpu_custom_call.1}
  #allocation0 [shape = 'u32[]', space=smem, size = 0x4, offset = 0x4, fixed_abs, tag = 'smem constant byte address 0x4 - core index']
  #allocation1 [shape = 'u32[72,128]{1,0:T(1,128)}', space=vmem, size = 0x9000, scoped, tag = 'internal scratch']
  %s0 = inlined_call_operand.hbm [shape: f32[8,256], index: 0, kind: input, shape index: {}]
  %s1 = inlined_call_operand.vmem [shape: f32[8,2], index: 1, kind: input, shape index: {}]
  %s2 = inlined_call_operand.hbm [shape: f32[8,256], index: 2, kind: output, shape index: {}]
  %s3 = sld [smem:[#allocation0]]
  $region22: #{tpu_custom_call.1} parent=0
    _
  %s5 = ssub.s32 1, %s3
  %s6 = scalar_select 0, %s5, %s3
  $region1: #{tpu_custom_call.1} parent=0
    #allocation2 [shape = 'u8[8192]{0}', space=vmem, size = 0x2000, scoped, tag = 'input window, operand 0, single buffered']
    #allocation3 [shape = 's32[1]{0}', space=sflag, size = 0x4, scoped, tag = 'scoped memory for tpu_custom_call.1']
    #allocation4 [shape = 's32[1]{0}', space=sflag, size = 0x4, scoped, tag = 'scoped memory for tpu_custom_call.1']
    #allocation5 [shape = 'u8[8192]{0}', space=vmem, size = 0x2000, scoped, tag = 'output window, operand 0, single buffered']
    %7 = vsyncpa [#allocation3], 0
    %8 = vsyncpa [#allocation4], 0
    // Predicated region
    $region2: #{tpu_custom_call.1} parent=1 // pred_check
      _
    $region3: #{tpu_custom_call.1} parent=1 // pred_check_branch
      %10 = sbr.rel (0) target = $region5
    $region4: #{tpu_custom_call.1} parent=1 // pred_region
      %12 = vsyncadd [#allocation3], 0
      %s14 = sshll.u32 %s0, 4
      %s15 = int_to_ptr.hbm [resolvable:$true] %s14
      %s16 = sshll.u32 [#allocation2], 4
      %s17 = int_to_ptr.vmem [resolvable:$true] %s16
      %19 = dma.hbm_to_vmem [thread:$0]  %s15, 256, %s17, [#allocation3]
    $region5: #{tpu_custom_call.1} parent=1 // pred_fallthru
      _
    // Predicated region
    $region6: #{tpu_custom_call.1} parent=1 // pred_check
      _
    $region7: #{tpu_custom_call.1} parent=1 // pred_check_branch
      %21 = sbr.rel (0) target = $region9
    $region8: #{tpu_custom_call.1} parent=1 // pred_region
      _
    $region9: #{tpu_custom_call.1} parent=1 // pred_fallthru
      _
    // Predicated region
    $region10: #{tpu_custom_call.1} parent=1 // pred_check
      _
    $region11: #{tpu_custom_call.1} parent=1 // pred_check_branch
      %23 = sbr.rel (0) target = $region13
    $region12: #{tpu_custom_call.1} parent=1 // pred_region
      %25 = dma.done [#allocation3], 256
    $region13: #{tpu_custom_call.1} parent=1 // pred_fallthru
      _
    %v26 = vld [vmem:[#allocation2] sm:$0xff]
    %v27 = vld [vmem:[#allocation2 + $0x8] sm:$0xff]
    %v28 = vadd.f32 %v26, %v27
    %29 = vadd.xlane.f32.xlu0 %v28
    %v30 = vpop.xlane.xlu0 %29
    %v31 = vmul.f32 %v30, 0.00390625
    %v32 = vsub.f32 %v26, %v31
    %v33 = vsub.f32 %v27, %v31
    %v34 = vmul.f32 %v32, %v32
    %v35 = vmul.f32 %v33, %v33
    %v36 = vadd.f32 %v34, %v35
    %37 = vadd.xlane.f32.xlu0 %v36
    %v38 = vpop.xlane.xlu0 %37
    %v39 = vmul.f32 %v38, 0.00390625
    %v40 = vld [vmem:[%s1] sm:$0xff]
    %v41 = vadd.f32 %v39, 1e-05
    %v42 = vrsqrt.pop %v41
    %v43 = vmul.f32 %v42, %v41
    %v44 = vmul.f32 %v43, %v42
    %v45 = vmul.f32 0.5, %v44
    %v46 = vsub.f32 1.5, %v45
    %v47 = vmul.f32 %v42, %v46
    %vm48 = vweird.f32 %v41
    %vm49 = vweird.f32 %v42
    %vm50 = vmor %vm48, %vm49
    %v51 = vsel %vm50, %v42, %v47
    %v52 = vmul.f32 %v40, %v51
    %v53 = vmul.f32 %v31, %v52
    %55 = vrot.lane.b32.xlu0 %v53, 1
    %v56 = vpop.permute.xlu0 %55
    %v58 = vsub.f32 %v40, %v56
    %60 = vset.pattern.permute.xlu0 0
    %61 = vperm.xlu0 %60, %v52
    %v62 = vpop.permute.xlu0 %61
    %v64 = vmul.f32 %v26, %v62
    %v65 = vmul.f32 %v27, %v62
    %67 = vset.pattern.permute.xlu0 1
    %68 = vperm.xlu0 %67, %v58
    %v69 = vpop.permute.xlu0 %68
    %v71 = vadd.f32 %v64, %v69
    %v72 = vadd.f32 %v65, %v69
    %73 = vst [vmem:[#allocation5] sm:$0xff] %v71
    %74 = vst [vmem:[#allocation5 + $0x8] sm:$0xff] %v72
    // Predicated region
    $region14: #{tpu_custom_call.1} parent=1 // pred_check
      _
    $region15: #{tpu_custom_call.1} parent=1 // pred_check_branch
      %76 = sbr.rel (0) target = $region17
    $region16: #{tpu_custom_call.1} parent=1 // pred_region
      %78 = vsyncadd [#allocation4], 0
      %s80 = sshll.u32 [#allocation5], 4
      %s81 = int_to_ptr.vmem [resolvable:$true] %s80
      %s82 = sshll.u32 %s2, 4
      %s83 = int_to_ptr.hbm [resolvable:$true] %s82
      %85 = dma.vmem_to_hbm [thread:$0]  %s81, 256, %s83, [#allocation4]
    $region17: #{tpu_custom_call.1} parent=1 // pred_fallthru
      _
    // Predicated region
    $region18: #{tpu_custom_call.1} parent=1 // pred_check
      _
    $region19: #{tpu_custom_call.1} parent=1 // pred_check_branch
      %87 = sbr.rel (0) target = $region21
    $region20: #{tpu_custom_call.1} parent=1 // pred_region
      %89 = dma.done [#allocation4], 256
    $region21: #{tpu_custom_call.1} parent=1 // pred_fallthru
      _
    %90 = vsyncpa [#allocation3], 1
    %91 = vsyncpa [#allocation4], 1

</llo_original>
